<compile_context>
chip_gen: v5e
topology: v5e:2x2
jax: 0.10.0
libtpu: 0.0.40
codegen_flags: <defaults>
</compile_context>

<pallas_src>
import functools

import jax
import jax.numpy as jnp
from jax.experimental import pallas as pl
from jax.experimental.pallas import tpu as pltpu


def hwd_kernel(x_ref, w_ref, b_ref, o_ref, *scratch, wp):
    """Fused (Haar+BN-folded) 3x3 conv + bias + SiLU for one batch element.

    x_ref : (L, 4C)    zero-padded, spatially-flattened quad input (compute dtype)
                       L = (Hh+3) * Wp, row-major over (row, col), Wp = Wh + 2
    w_ref : (9*4C, O)  folded weight, K ordered (dy, dx, quad*C) ; BN scale folded in
    b_ref : (1, O)     folded BN bias (f32)
    o_ref : (N, O)     N = Hh * Wp flattened conv outputs (cols j >= Wh are junk
                       from the row overhang and get sliced off by the wrapper)
    scratch: optional (N, 9*4C) im2col staging buffer (present only when 4C < 128)
    """
    _, c4 = x_ref.shape
    _, o = w_ref.shape
    n = o_ref.shape[0]

    if scratch:
        # Small channel count: stage an im2col slab so the MXU sees one matmul
        # with a well-filled contraction dim K = 9*4C.
        patches_ref, = scratch
        for dy in range(3):
            for dx in range(3):
                t = dy * 3 + dx
                s = dy * wp + dx
                patches_ref[:, t * c4:(t + 1) * c4] = x_ref[s:s + n, :]
        acc = jnp.dot(patches_ref[...], w_ref[...],
                      preferred_element_type=jnp.float32)          # (N, O) f32
    else:
        # Large channel count: nine whole-plane matmuls, K = 4C each.
        acc = jnp.zeros((n, o), jnp.float32)
        for dy in range(3):
            for dx in range(3):
                t = dy * 3 + dx
                s = dy * wp + dx
                acc = acc + jnp.dot(x_ref[s:s + n, :],
                                    w_ref[t * c4:(t + 1) * c4, :],
                                    preferred_element_type=jnp.float32)

    y = acc + b_ref[...]                                   # folded BN bias
    sig = pl.reciprocal(1.0 + jnp.exp(-y), approx=True)    # sigmoid on the EUP
    o_ref[...] = y * sig                                   # SiLU
    # TODO(synk): lane-dense (O, spatial) output layout and a row-tiled spatial
    # grid (needed for v7x's 64 MiB VMEM at production image sizes) are not
    # implemented; whole-image-per-batch blocks are used here.


def fold_hwd_params(w_hwio, bn_scale):
    """Fold the Haar analysis mix and the BN scale into the conv weight.

    w_hwio: (3, 3, 4C, O) with input-channel groups ordered [LL, HL, LH, HH]
            (matching torch.cat([yL, y_HL, y_LH, y_HH], dim=1)).
    Returns (9*4C, O) with rows ordered (dy, dx, quad*C), quad order [a, b, c, d].
    """
    kh, kw, c4, o = w_hwio.shape
    assert (kh, kw) == (3, 3) and c4 % 4 == 0
    c = c4 // 4
    w = w_hwio.reshape(kh, kw, 4, c, o).astype(jnp.float32)
    w_ll, w_hl, w_lh, w_hh = w[:, :, 0], w[:, :, 1], w[:, :, 2], w[:, :, 3]
    w_a = 0.5 * (w_ll + w_hl + w_lh + w_hh)
    w_b = 0.5 * (w_ll + w_hl - w_lh - w_hh)
    w_c = 0.5 * (w_ll - w_hl + w_lh - w_hh)
    w_d = 0.5 * (w_ll - w_hl - w_lh + w_hh)
    wq = jnp.stack([w_a, w_b, w_c, w_d], axis=2)            # (3, 3, 4, C, O)
    wq = wq * bn_scale.reshape(1, 1, 1, 1, o)               # fold BN scale
    return wq.reshape(kh * kw * c4, o)


def hwd_forward(x_nchw, w_hwio, bn_scale, bn_bias, *, compute_dtype=jnp.bfloat16):
    """x_nchw: (B, C, H, W) float32 -> (B, O, H/2, W/2) float32."""
    B, C, H, W = x_nchw.shape
    assert H % 2 == 0 and W % 2 == 0
    Hh, Wh = H // 2, W // 2
    Hp, Wp = Hh + 2, Wh + 2
    C4 = 4 * C
    KK = 9 * C4
    O = w_hwio.shape[-1]
    N = Hh * Wp                 # flattened output rows (with 2 junk cols per row)
    L = (Hp + 1) * Wp           # +1 zero row so every tap window stays in bounds

    # Deinterleave each 2x2 block into channel groups [a | b | c | d] (one
    # contiguous array, a single transpose), add the zero halo for the 'same'
    # 3x3 conv, flatten (h, w) so every conv tap is a plain 2-D window slice.
    quad = x_nchw.reshape(B, C, Hh, 2, Wh, 2)
    quad = jnp.transpose(quad, (0, 2, 4, 3, 5, 1)).reshape(B, Hh, Wh, C4)
    quad = jnp.pad(quad, ((0, 0), (1, 2), (1, 1), (0, 0)))
    quad = quad.reshape(B, L, C4).astype(compute_dtype)

    w2d = fold_hwd_params(w_hwio, bn_scale).astype(compute_dtype)   # (9*4C, O)
    bias = bn_bias.reshape(1, O).astype(jnp.float32)

    kernel = functools.partial(hwd_kernel, wp=Wp)
    scratch_shapes = [pltpu.VMEM((N, KK), compute_dtype)] if C4 < 128 else []

    out = pl.pallas_call(
        kernel,
        out_shape=jax.ShapeDtypeStruct((B, N, O), jnp.float32),
        grid=(B,),
        in_specs=[
            pl.BlockSpec((None, L, C4), lambda b: (b, 0, 0)),
            pl.BlockSpec((KK, O), lambda b: (0, 0)),
            pl.BlockSpec((1, O), lambda b: (0, 0)),
        ],
        out_specs=pl.BlockSpec((None, N, O), lambda b: (b, 0, 0)),
        scratch_shapes=scratch_shapes,
        compiler_params=pltpu.CompilerParams(
            dimension_semantics=("parallel",)),
    )(quad, w2d, bias)

    out = out.reshape(B, Hh, Wp, O)[:, :, :Wh, :]     # drop overhang columns
    return jnp.transpose(out, (0, 3, 1, 2))           # back to NCHW


def hwd_reference(x_nchw, w_hwio, bn_scale, bn_bias):
    """Pure-JAX f32 reference (original un-folded path)."""
    B, C, H, W = x_nchw.shape
    xr = x_nchw.reshape(B, C, H // 2, 2, W // 2, 2)
    a = xr[:, :, :, 0, :, 0]
    b = xr[:, :, :, 0, :, 1]
    c = xr[:, :, :, 1, :, 0]
    d = xr[:, :, :, 1, :, 1]
    ll   = (a + b + c + d) * 0.5
    d_h  = (a + b - c - d) * 0.5
    d_w  = (a - b + c - d) * 0.5
    d_hw = (a - b - c + d) * 0.5
    wt = jnp.concatenate([ll, d_h, d_w, d_hw], axis=1)      # (B, 4C, Hh, Wh)
    y = jax.lax.conv_general_dilated(
        wt, w_hwio, window_strides=(1, 1), padding='SAME',
        dimension_numbers=('NCHW', 'HWIO', 'NCHW'))
    y = y * bn_scale[None, :, None, None] + bn_bias[None, :, None, None]
    return y * jax.nn.sigmoid(y)


if __name__ == "__main__":
    B, C, H, W = 2, 4, 16, 16       # in_ch = 4
    O = 8                           # out_ch = 8
    eps = 1e-3                      # BN eps from the module

    key = jax.random.PRNGKey(0)
    k_x, k_w, k_g, k_b, k_m = jax.random.split(key, 5)

    x = jax.random.normal(k_x, (B, C, H, W), jnp.float32)
    # Conv weight (PyTorch (O, 4C, 3, 3) equivalent), stored as HWIO.
    w_hwio = 0.1 * jax.random.normal(k_w, (3, 3, 4 * C, O), jnp.float32)
    # BN params / running stats (inference-mode BN folded into scale & bias).
    gamma = 1.0 + 0.1 * jax.random.normal(k_g, (O,), jnp.float32)
    beta = 0.1 * jax.random.normal(k_b, (O,), jnp.float32)
    running_mean = 0.05 * jax.random.normal(k_m, (O,), jnp.float32)
    running_var = jnp.ones((O,), jnp.float32)
    bn_scale = gamma / jnp.sqrt(running_var + eps)
    bn_bias = beta - running_mean * bn_scale
    # TODO(synk): training-mode BN (batch statistics + momentum update) is not
    # implemented; inference-mode running stats are folded into scale/bias.

    out = hwd_forward(x, w_hwio, bn_scale, bn_bias)
    out = jax.block_until_ready(out)

    ref = hwd_reference(x, w_hwio, bn_scale, bn_bias)
    assert out.shape == (B, O, H // 2, W // 2)
    max_err = float(jnp.max(jnp.abs(out - ref)))
    # bf16 MXU operands + approx-reciprocal SiLU vs. a pure-f32 reference.
    assert max_err < 5e-2, f"mismatch vs reference: {max_err}"

    print("KERNEL_OK")
</pallas_src>

<mosaic_0001>
module attributes {stable_mosaic.version = 11 : i64} {
  func.func @hwd_kernel(%arg0: i32, %arg1: memref<1x110x16xbf16, #tpu.memory_space<vmem>>, %arg2: memref<144x8xbf16, #tpu.memory_space<vmem>>, %arg3: memref<1x8xf32, #tpu.memory_space<vmem>>, %arg4: memref<1x80x8xf32, #tpu.memory_space<vmem>>, %arg5: memref<80x144xbf16, #tpu.memory_space<vmem>>) attributes {dimension_semantics = [#tpu.dimension_semantics<parallel>], iteration_bounds = array<i64: 2>, scalar_prefetch = 0 : i64, scratch_operands = 1 : i64, tpu.core_type = #tpu.core_type<tc>, window_params = [{transform_indices = @transform_0, window_bounds = array<i64: 1, 110, 16>}, {pipeline_mode = #tpu.pipeline_mode<synchronous>, transform_indices = @transform_1, window_bounds = array<i64: 144, 8>}, {pipeline_mode = #tpu.pipeline_mode<synchronous>, transform_indices = @transform_2, window_bounds = array<i64: 1, 8>}, {transform_indices = @transform_3, window_bounds = array<i64: 1, 80, 8>}]} {
    %c0 = arith.constant 0 : index
    %c0_0 = arith.constant 0 : index
    %c0_1 = arith.constant 0 : index
    %0 = vector.load %arg1[%c0, %c0_0, %c0_1] : memref<1x110x16xbf16, #tpu.memory_space<vmem>>, vector<1x80x16xbf16>
    %1 = vector.shape_cast %0 : vector<1x80x16xbf16> to vector<80x16xbf16>
    %c0_2 = arith.constant 0 : index
    %c0_3 = arith.constant 0 : index
    %2 = vector.load %arg5[%c0_2, %c0_3] : memref<80x144xbf16, #tpu.memory_space<vmem>>, vector<80x16xbf16>
    tpu.vector_store %arg5[%c0_2, %c0_3], %1 {strides = array<i32>} : memref<80x144xbf16, #tpu.memory_space<vmem>>, vector<80x16xbf16>,
    %c0_4 = arith.constant 0 : index
    %c1 = arith.constant 1 : index
    %c0_5 = arith.constant 0 : index
    %3 = vector.load %arg1[%c0_4, %c1, %c0_5] : memref<1x110x16xbf16, #tpu.memory_space<vmem>>, vector<1x80x16xbf16>
    %4 = vector.shape_cast %3 : vector<1x80x16xbf16> to vector<80x16xbf16>
    %c0_6 = arith.constant 0 : index
    %c16 = arith.constant 16 : index
    %5 = vector.load %arg5[%c0_6, %c16] : memref<80x144xbf16, #tpu.memory_space<vmem>>, vector<80x16xbf16>
    tpu.vector_store %arg5[%c0_6, %c16], %4 {strides = array<i32>} : memref<80x144xbf16, #tpu.memory_space<vmem>>, vector<80x16xbf16>,
    %c0_7 = arith.constant 0 : index
    %c2 = arith.constant 2 : index
    %c0_8 = arith.constant 0 : index
    %6 = vector.load %arg1[%c0_7, %c2, %c0_8] : memref<1x110x16xbf16, #tpu.memory_space<vmem>>, vector<1x80x16xbf16>
    %7 = vector.shape_cast %6 : vector<1x80x16xbf16> to vector<80x16xbf16>
    %c0_9 = arith.constant 0 : index
    %c32 = arith.constant 32 : index
    %8 = vector.load %arg5[%c0_9, %c32] : memref<80x144xbf16, #tpu.memory_space<vmem>>, vector<80x16xbf16>
    tpu.vector_store %arg5[%c0_9, %c32], %7 {strides = array<i32>} : memref<80x144xbf16, #tpu.memory_space<vmem>>, vector<80x16xbf16>,
    %c0_10 = arith.constant 0 : index
    %c10 = arith.constant 10 : index
    %c0_11 = arith.constant 0 : index
    %9 = vector.load %arg1[%c0_10, %c10, %c0_11] : memref<1x110x16xbf16, #tpu.memory_space<vmem>>, vector<1x80x16xbf16>
    %10 = vector.shape_cast %9 : vector<1x80x16xbf16> to vector<80x16xbf16>
    %c0_12 = arith.constant 0 : index
    %c48 = arith.constant 48 : index
    %11 = vector.load %arg5[%c0_12, %c48] : memref<80x144xbf16, #tpu.memory_space<vmem>>, vector<80x16xbf16>
    tpu.vector_store %arg5[%c0_12, %c48], %10 {strides = array<i32>} : memref<80x144xbf16, #tpu.memory_space<vmem>>, vector<80x16xbf16>,
    %c0_13 = arith.constant 0 : index
    %c11 = arith.constant 11 : index
    %c0_14 = arith.constant 0 : index
    %12 = vector.load %arg1[%c0_13, %c11, %c0_14] : memref<1x110x16xbf16, #tpu.memory_space<vmem>>, vector<1x80x16xbf16>
    %13 = vector.shape_cast %12 : vector<1x80x16xbf16> to vector<80x16xbf16>
    %c0_15 = arith.constant 0 : index
    %c64 = arith.constant 64 : index
    %14 = vector.load %arg5[%c0_15, %c64] : memref<80x144xbf16, #tpu.memory_space<vmem>>, vector<80x16xbf16>
    tpu.vector_store %arg5[%c0_15, %c64], %13 {strides = array<i32>} : memref<80x144xbf16, #tpu.memory_space<vmem>>, vector<80x16xbf16>,
    %c0_16 = arith.constant 0 : index
    %c12 = arith.constant 12 : index
    %c0_17 = arith.constant 0 : index
    %15 = vector.load %arg1[%c0_16, %c12, %c0_17] : memref<1x110x16xbf16, #tpu.memory_space<vmem>>, vector<1x80x16xbf16>
    %16 = vector.shape_cast %15 : vector<1x80x16xbf16> to vector<80x16xbf16>
    %c0_18 = arith.constant 0 : index
    %c80 = arith.constant 80 : index
    %17 = vector.load %arg5[%c0_18, %c80] : memref<80x144xbf16, #tpu.memory_space<vmem>>, vector<80x16xbf16>
    tpu.vector_store %arg5[%c0_18, %c80], %16 {strides = array<i32>} : memref<80x144xbf16, #tpu.memory_space<vmem>>, vector<80x16xbf16>,
    %c0_19 = arith.constant 0 : index
    %c20 = arith.constant 20 : index
    %c0_20 = arith.constant 0 : index
    %18 = vector.load %arg1[%c0_19, %c20, %c0_20] : memref<1x110x16xbf16, #tpu.memory_space<vmem>>, vector<1x80x16xbf16>
    %19 = vector.shape_cast %18 : vector<1x80x16xbf16> to vector<80x16xbf16>
    %c0_21 = arith.constant 0 : index
    %c96 = arith.constant 96 : index
    %20 = vector.load %arg5[%c0_21, %c96] : memref<80x144xbf16, #tpu.memory_space<vmem>>, vector<80x16xbf16>
    tpu.vector_store %arg5[%c0_21, %c96], %19 {strides = array<i32>} : memref<80x144xbf16, #tpu.memory_space<vmem>>, vector<80x16xbf16>,
    %c0_22 = arith.constant 0 : index
    %c21 = arith.constant 21 : index
    %c0_23 = arith.constant 0 : index
    %21 = vector.load %arg1[%c0_22, %c21, %c0_23] : memref<1x110x16xbf16, #tpu.memory_space<vmem>>, vector<1x80x16xbf16>
    %22 = vector.shape_cast %21 : vector<1x80x16xbf16> to vector<80x16xbf16>
    %c0_24 = arith.constant 0 : index
    %c112 = arith.constant 112 : index
    %23 = vector.load %arg5[%c0_24, %c112] : memref<80x144xbf16, #tpu.memory_space<vmem>>, vector<80x16xbf16>
    tpu.vector_store %arg5[%c0_24, %c112], %22 {strides = array<i32>} : memref<80x144xbf16, #tpu.memory_space<vmem>>, vector<80x16xbf16>,
    %c0_25 = arith.constant 0 : index
    %c22 = arith.constant 22 : index
    %c0_26 = arith.constant 0 : index
    %24 = vector.load %arg1[%c0_25, %c22, %c0_26] : memref<1x110x16xbf16, #tpu.memory_space<vmem>>, vector<1x80x16xbf16>
    %25 = vector.shape_cast %24 : vector<1x80x16xbf16> to vector<80x16xbf16>
    %c0_27 = arith.constant 0 : index
    %c128 = arith.constant 128 : index
    %26 = vector.load %arg5[%c0_27, %c128] : memref<80x144xbf16, #tpu.memory_space<vmem>>, vector<80x16xbf16>
    tpu.vector_store %arg5[%c0_27, %c128], %25 {strides = array<i32>} : memref<80x144xbf16, #tpu.memory_space<vmem>>, vector<80x16xbf16>,
    %c0_28 = arith.constant 0 : index
    %c0_29 = arith.constant 0 : index
    %27 = vector.load %arg5[%c0_28, %c0_29] : memref<80x144xbf16, #tpu.memory_space<vmem>>, vector<80x144xbf16>
    %c0_30 = arith.constant 0 : index
    %c0_31 = arith.constant 0 : index
    %28 = vector.load %arg2[%c0_30, %c0_31] : memref<144x8xbf16, #tpu.memory_space<vmem>>, vector<144x8xbf16>
    %cst = arith.constant dense<0.000000e+00> : vector<80x8xf32>
    %29 = tpu.matmul %27, %28, %cst {dimension_numbers = #tpu.dot_dimension_numbers<[1], [0], [0], [1], [0, 0, 1, 1], [], []>} : vector<80x144xbf16>, vector<144x8xbf16>, vector<80x8xf32> -> vector<80x8xf32>
    %c0_32 = arith.constant 0 : index
    %c0_33 = arith.constant 0 : index
    %30 = vector.load %arg3[%c0_32, %c0_33] : memref<1x8xf32, #tpu.memory_space<vmem>>, vector<1x8xf32>
    %31 = vector.broadcast %30 : vector<1x8xf32> to vector<80x8xf32>
    %32 = arith.addf %29, %31 : vector<80x8xf32>
    %cst_34 = arith.constant 0.000000e+00 : f32
    %33 = vector.broadcast %cst_34 : f32 to vector<80x8xf32>
    %34 = arith.subf %33, %32 : vector<80x8xf32>
    %35 = math.exp %34 : vector<80x8xf32>
    %cst_35 = arith.constant 1.000000e+00 : f32
    %36 = vector.broadcast %cst_35 : f32 to vector<80x8xf32>
    %37 = arith.addf %36, %35 : vector<80x8xf32>
    %38 = tpu.reciprocal %37 {approx = true} : vector<80x8xf32> -> vector<80x8xf32>
    %39 = arith.mulf %32, %38 : vector<80x8xf32>
    %c0_36 = arith.constant 0 : index
    %c0_37 = arith.constant 0 : index
    %c0_38 = arith.constant 0 : index
    %40 = vector.load %arg4[%c0_36, %c0_37, %c0_38] : memref<1x80x8xf32, #tpu.memory_space<vmem>>, vector<1x80x8xf32>
    %41 = vector.shape_cast %40 : vector<1x80x8xf32> to vector<80x8xf32>
    %42 = vector.shape_cast %39 : vector<80x8xf32> to vector<1x80x8xf32>
    tpu.vector_store %arg4[%c0_36, %c0_37, %c0_38], %42 {strides = array<i32>} : memref<1x80x8xf32, #tpu.memory_space<vmem>>, vector<1x80x8xf32>,
    return
  }
  func.func @transform_0(%arg0: i32) -> (i32, i32, i32) {
    %c0_i32 = arith.constant 0 : i32
    %c0_i32_0 = arith.constant 0 : i32
    %c0_i32_1 = arith.constant 0 : i32
    return %arg0, %c0_i32, %c0_i32_0 : i32, i32, i32
  }
  func.func @transform_1(%arg0: i32) -> (i32, i32) {
    %c0_i32 = arith.constant 0 : i32
    %c0_i32_0 = arith.constant 0 : i32
    %c0_i32_1 = arith.constant 0 : i32
    return %c0_i32, %c0_i32_0 : i32, i32
  }
  func.func @transform_2(%arg0: i32) -> (i32, i32) {
    %c0_i32 = arith.constant 0 : i32
    %c0_i32_0 = arith.constant 0 : i32
    %c0_i32_1 = arith.constant 0 : i32
    return %c0_i32, %c0_i32_0 : i32, i32
  }
  func.func @transform_3(%arg0: i32) -> (i32, i32, i32) {
    %c0_i32 = arith.constant 0 : i32
    %c0_i32_0 = arith.constant 0 : i32
    %c0_i32_1 = arith.constant 0 : i32
    return %arg0, %c0_i32, %c0_i32_0 : i32, i32, i32
  }
}

</mosaic_0001>

<llo_original>
// kernel: tpu_custom_call.1
$region0: #{tpu_custom_call.1}
  #allocation0 [shape = 'u32[]', space=smem, size = 0x4, offset = 0x4, fixed_abs, tag = 'smem constant byte address 0x4 - core index']
  #allocation1 [shape = 'u32[72,128]{1,0:T(1,128)}', space=vmem, size = 0x9000, scoped, tag = 'internal scratch']
  #allocation2 [shape = 'bf16[80,144]{1,0:T(8,128)(2,1)}', space=vmem, size = 0xa000, scoped, tag = 'scratch operand']
  %s0 = inlined_call_operand.vmem [shape: bf16[2,110,16], index: 0, kind: input, shape index: {}]
  %s1 = inlined_call_operand.vmem [shape: bf16[144,8], index: 1, kind: input, shape index: {}]
  %s2 = inlined_call_operand.vmem [shape: f32[1,8], index: 2, kind: input, shape index: {}]
  %s3 = inlined_call_operand.vmem [shape: f32[2,80,8], index: 3, kind: output, shape index: {}]
  %s4 = sld [smem:[#allocation0]]
  $region45: #{tpu_custom_call.1} parent=0
    _
  %s6 = ssub.s32 1, %s4
  %s7 = scalar_select 0, %s6, %s4
  loop: start=0, step=1, limit=4
  $region2: #{tpu_custom_call.1} parent=0 // loop_pre_header
    _
  $region3: #{tpu_custom_call.1} parent=0 // loop_header
    %s9 = sphi 0, %s13
    %p10 = scmp.ge.s32.totalorder %s9, 4
    %s19 = sphi 0, %s21
    %s22 = sphi 0, %s19
    %s23 = sphi 0, %s22
    %s39 = sphi 0, %s23
    %s43 = sphi 0, %s43
    %s45 = sphi 0, %s43
    %s46 = sphi 0, %s45
    %s60 = sphi 0, %s46
    %s64 = sphi 0, %s64
    %s66 = sphi 0, %s64
    %s67 = sphi 0, %s66
    %s81 = sphi 0, %s67
    %s87 = sphi 0, %s89
    %s90 = sphi 0, %s87
    %s91 = sphi 0, %s90
    %s107 = sphi 0, %s91
  $region4: #{tpu_custom_call.1} parent=0 // loop_header_branch
    %12 = sbr.rel (%p10) target = $region8
  $region5: #{tpu_custom_call.1} parent=0 // loop_body
    %s14 = ssub.s32 %s9, 1
    %s15 = ssub.s32 %s9, 2
    %s16 = sadd.s32 %s9, 1
    %s17 = ssub.s32 %s9, %s16
    %p18 = scmp.eq.s32.totalorder %s17, 0
    %s20 = sadd.s32 %s19, 1
    %s21 = scalar_select %p18, %s19, %s20
    %p24 = pneg %p18
    %p25 = scmp.eq.s32.totalorder %s9, 1
    %p26 = por %p24, %p25
    %p27 = scmp.ne.s32.totalorder %s19, %s22
    %p28 = scmp.eq.s32.totalorder %s9, 0
    %p29 = por %p27, %p28
    %p30 = scmp.ne.s32.totalorder %s19, %s22
    %p31 = scmp.eq.s32.totalorder %s14, 1
    %p32 = por %p30, %p31
    %p33 = scmp.ne.s32.totalorder %s22, %s23
    %p34 = scmp.eq.s32.totalorder %s14, 0
    %p35 = por %p33, %p34
    %p36 = scmp.ne.s32.totalorder %s22, %s23
    %p37 = scmp.eq.s32.totalorder %s15, 1
    %p38 = por %p36, %p37
    %p40 = scmp.ne.s32.totalorder %s23, %s39
    %p41 = scmp.eq.s32.totalorder %s15, 0
    %p42 = por %p40, %p41
    %s44 = sadd.s32 %s43, 1
    %p47 = scmp.eq.s32.totalorder %s9, 1
    %p48 = scmp.ne.s32.totalorder %s43, %s45
    %p49 = scmp.eq.s32.totalorder %s9, 0
    %p50 = por %p48, %p49
    %p51 = scmp.ne.s32.totalorder %s43, %s45
    %p52 = scmp.eq.s32.totalorder %s14, 1
    %p53 = por %p51, %p52
    %p54 = scmp.ne.s32.totalorder %s45, %s46
    %p55 = scmp.eq.s32.totalorder %s14, 0
    %p56 = por %p54, %p55
    %p57 = scmp.ne.s32.totalorder %s45, %s46
    %p58 = scmp.eq.s32.totalorder %s15, 1
    %p59 = por %p57, %p58
    %p61 = scmp.ne.s32.totalorder %s46, %s60
    %p62 = scmp.eq.s32.totalorder %s15, 0
    %p63 = por %p61, %p62
    %s65 = sadd.s32 %s64, 1
    %p68 = scmp.eq.s32.totalorder %s9, 1
    %p69 = scmp.ne.s32.totalorder %s64, %s66
    %p70 = scmp.eq.s32.totalorder %s9, 0
    %p71 = por %p69, %p70
    %p72 = scmp.ne.s32.totalorder %s64, %s66
    %p73 = scmp.eq.s32.totalorder %s14, 1
    %p74 = por %p72, %p73
    %p75 = scmp.ne.s32.totalorder %s66, %s67
    %p76 = scmp.eq.s32.totalorder %s14, 0
    %p77 = por %p75, %p76
    %p78 = scmp.ne.s32.totalorder %s66, %s67
    %p79 = scmp.eq.s32.totalorder %s15, 1
    %p80 = por %p78, %p79
    %p82 = scmp.ne.s32.totalorder %s67, %s81
    %p83 = scmp.eq.s32.totalorder %s15, 0
    %p84 = por %p82, %p83
    %s85 = ssub.s32 %s9, %s16
    %p86 = scmp.eq.s32.totalorder %s85, 0
    %s88 = sadd.s32 %s87, 1
    %s89 = scalar_select %p86, %s87, %s88
    %p92 = pneg %p86
    %p93 = scmp.eq.s32.totalorder %s9, 1
    %p94 = por %p92, %p93
    %p95 = scmp.ne.s32.totalorder %s87, %s90
    %p96 = scmp.eq.s32.totalorder %s9, 0
    %p97 = por %p95, %p96
    %p98 = scmp.ne.s32.totalorder %s87, %s90
    %p99 = scmp.eq.s32.totalorder %s14, 1
    %p100 = por %p98, %p99
    %p101 = scmp.ne.s32.totalorder %s90, %s91
    %p102 = scmp.eq.s32.totalorder %s14, 0
    %p103 = por %p101, %p102
    %p104 = scmp.ne.s32.totalorder %s90, %s91
    %p105 = scmp.eq.s32.totalorder %s15, 1
    %p106 = por %p104, %p105
    %p108 = scmp.ne.s32.totalorder %s91, %s107
    %p109 = scmp.eq.s32.totalorder %s15, 0
    %p110 = por %p108, %p109
    %p111 = scmp.le.s32.totalorder 1, %s9
    %p112 = scmp.lt.s32.totalorder %s9, 3
    %p113 = pnand %p111, %p112
    %p114 = pneg %p113
    // Predicated region
    $region9: #{tpu_custom_call.1} parent=5 // pred_check
      _
    $region10: #{tpu_custom_call.1} parent=5 // pred_check_branch
      %116 = sbr.rel (%p113) target = $region12
    $region11: #{tpu_custom_call.1} parent=5 // pred_region
      %s117 = ssub.s32 %s9, 1
      // Predicated region
      $region13: #{tpu_custom_call.1} parent=11 // pred_check
        %p118 = pneg %p56
      $region14: #{tpu_custom_call.1} parent=11 // pred_check_branch
        %120 = sbr.rel (%p118) target = $region16
      $region15: #{tpu_custom_call.1} parent=11 // pred_region
        _
      $region16: #{tpu_custom_call.1} parent=11 // pred_fallthru
        _
      // Predicated region
      $region17: #{tpu_custom_call.1} parent=11 // pred_check
        %p121 = pneg %p77
      $region18: #{tpu_custom_call.1} parent=11 // pred_check_branch
        %123 = sbr.rel (%p121) target = $region20
      $region19: #{tpu_custom_call.1} parent=11 // pred_region
        _
      $region20: #{tpu_custom_call.1} parent=11 // pred_fallthru
        _
    $region12: #{tpu_custom_call.1} parent=5 // pred_fallthru
      _
    %p124 = scmp.lt.s32.totalorder %s9, 2
    // Predicated region
    $region21: #{tpu_custom_call.1} parent=5 // pred_check
      %p125 = pneg %p124
    $region22: #{tpu_custom_call.1} parent=5 // pred_check_branch
      %127 = sbr.rel (%p125) target = $region24
    $region23: #{tpu_custom_call.1} parent=5 // pred_region
      // Predicated region
      $region25: #{tpu_custom_call.1} parent=23 // pred_check
        %p128 = pneg %p29
      $region26: #{tpu_custom_call.1} parent=23 // pred_check_branch
        %130 = sbr.rel (%p128) target = $region28
      $region27: #{tpu_custom_call.1} parent=23 // pred_region
        %p131 = scmp.lt.s32.totalorder %s9, 1
        %s132 = scalar_select %p131, %s9, 1
        %s133 = smul.addr %s132, 14
        %s134 = smul.addr %s133, 4
        %s135 = scalar_lea.vmem %s0, %s134
      $region28: #{tpu_custom_call.1} parent=23 // pred_fallthru
        _
    $region24: #{tpu_custom_call.1} parent=5 // pred_fallthru
      _
    %p136 = scmp.le.s32.totalorder 1, %s9
    %p137 = scmp.lt.s32.totalorder %s9, 3
    %p138 = pnand %p136, %p137
    %p139 = pneg %p138
    // Predicated region
    $region29: #{tpu_custom_call.1} parent=5 // pred_check
      _
    $region30: #{tpu_custom_call.1} parent=5 // pred_check_branch
      %141 = sbr.rel (%p138) target = $region32
    $region31: #{tpu_custom_call.1} parent=5 // pred_region
      %s142 = ssub.s32 %s9, 1
      %p143 = scmp.lt.s32.totalorder %s14, 1
      %s144 = scalar_select %p143, %s14, 1
      %s145 = smul.addr %s144, 14
      %s146 = smul.addr %s145, 4
      %s147 = scalar_lea.vmem %s0, %s146
      %p148 = pneg %p35
      %p149 = pneg %p32
      %p150 = pneg %p56
      %p151 = pneg %p53
      %p152 = pneg %p77
      %p153 = pneg %p74
      %p154 = pneg %p103
      %p155 = pneg %p100
      %p156 = scmp.lt.s32.totalorder %s14, 1
      %s157 = scalar_select %p156, %s14, 1
      %s158 = smul.addr %s157, 10
      %s159 = smul.addr %s158, 8
      %s160 = scalar_lea.vmem %s3, %s159
      %p161 = scmp.lt.s32.totalorder %s14, 1
      %s162 = scalar_select %p161, %s14, 1
      %s163 = smul.addr %s162, 14
      %s164 = smul.addr %s163, 4
      %s165 = scalar_lea.vmem %s0, %s164
      %p166 = scmp.lt.s32.totalorder %s14, 1
      %s167 = scalar_select %p166, %s14, 1
      %s168 = smul.addr %s167, 10
      %s169 = smul.addr %s168, 8
      %s170 = scalar_lea.vmem %s3, %s169
      %v172 = vld [vmem:[%s165] sm:$0xf]
      %v173 = vld [vmem:[%s165 + $0x4] sm:$0xf]
      %v174 = vld [vmem:[%s165 + $0x8] sm:$0xf]
      %v175 = vld [vmem:[%s165 + $0xc] sm:$0xf]
      %v176 = vld [vmem:[%s165 + $0x10] sm:$0xf]
      %v177 = vld [vmem:[%s165 + $0x14] sm:$0xf]
      %v178 = vld [vmem:[%s165 + $0x18] sm:$0xf]
      %v179 = vld [vmem:[%s165 + $0x1c] sm:$0xf]
      %v180 = vld [vmem:[%s165 + $0x20] sm:$0xf]
      %v181 = vld [vmem:[%s165 + $0x24] sm:$0xf]
      %vm182 = vcmask 125952
      %183 = vst.msk [vmem:[#allocation2] sm:$0xf] %vm182, %v172
      %184 = vst.msk [vmem:[#allocation2 + $0x8] sm:$0xf] %vm182, %v173
      %185 = vst.msk [vmem:[#allocation2 + $0x10] sm:$0xf] %vm182, %v174
      %186 = vst.msk [vmem:[#allocation2 + $0x18] sm:$0xf] %vm182, %v175
      %187 = vst.msk [vmem:[#allocation2 + $0x20] sm:$0xf] %vm182, %v176
      %188 = vst.msk [vmem:[#allocation2 + $0x28] sm:$0xf] %vm182, %v177
      %189 = vst.msk [vmem:[#allocation2 + $0x30] sm:$0xf] %vm182, %v178
      %190 = vst.msk [vmem:[#allocation2 + $0x38] sm:$0xf] %vm182, %v179
      %191 = vst.msk [vmem:[#allocation2 + $0x40] sm:$0xf] %vm182, %v180
      %192 = vst.msk [vmem:[#allocation2 + $0x48] sm:$0xf] %vm182, %v181
      %v193 = vld [vmem:[%s165] sm:$0xf]
      %v194 = vld [vmem:[%s165 + $0x4] sm:$0xf]
      %v195 = vld [vmem:[%s165 + $0x8] sm:$0xf]
      %v196 = vld [vmem:[%s165 + $0xc] sm:$0xf]
      %v197 = vld [vmem:[%s165 + $0x10] sm:$0xf]
      %v198 = vld [vmem:[%s165 + $0x14] sm:$0xf]
      %v199 = vld [vmem:[%s165 + $0x18] sm:$0xf]
      %v200 = vld [vmem:[%s165 + $0x1c] sm:$0xf]
      %v201 = vld [vmem:[%s165 + $0x20] sm:$0xf]
      %v202 = vld [vmem:[%s165 + $0x24] sm:$0xf]
      %v203 = vld [vmem:[%s165 + $0x28] sm:$0x1]
      %vm204 = vsmask.f32 3328
      %vm205 = vsmask.f32 7440
      %vm206 = vmor %vm204, %vm205
      %v208 = vshrl.u32 %v193, 16
      %v210 = vrot.slane %v208, 4
      %v211 = vshll.u32 %v193, 16
      %v213 = vrot.slane %v211, 5
      %v214 = vor.u32 %v210, %v213
      %v215 = vrot.slane %v214, 4
      %v217 = vshll.u32 %v194, 16
      %v219 = vrot.slane %v217, 5
      %v220 = vsel %vm206, %v215, %v219
      %v221 = vshrl.u32 %v194, 16
      %v223 = vrot.slane %v221, 4
      %v224 = vor.u32 %v223, %v219
      %v225 = vrot.slane %v224, 4
      %v227 = vshll.u32 %v195, 16
      %v229 = vrot.slane %v227, 5
      %v230 = vsel %vm206, %v225, %v229
      %v231 = vshrl.u32 %v195, 16
      %v233 = vrot.slane %v231, 4
      %v234 = vor.u32 %v233, %v229
      %v235 = vrot.slane %v234, 4
      %v237 = vshll.u32 %v196, 16
      %v239 = vrot.slane %v237, 5
      %v240 = vsel %vm206, %v235, %v239
      %v241 = vshrl.u32 %v196, 16
      %v243 = vrot.slane %v241, 4
      %v244 = vor.u32 %v243, %v239
      %v245 = vrot.slane %v244, 4
      %v247 = vshll.u32 %v197, 16
      %v249 = vrot.slane %v247, 5
      %v250 = vsel %vm206, %v245, %v249
      %v251 = vshrl.u32 %v197, 16
      %v253 = vrot.slane %v251, 4
      %v254 = vor.u32 %v253, %v249
      %v255 = vrot.slane %v254, 4
      %v257 = vshll.u32 %v198, 16
      %v259 = vrot.slane %v257, 5
      %v260 = vsel %vm206, %v255, %v259
      %v261 = vshrl.u32 %v198, 16
      %v263 = vrot.slane %v261, 4
      %v264 = vor.u32 %v263, %v259
      %v265 = vrot.slane %v264, 4
      %v267 = vshll.u32 %v199, 16
      %v269 = vrot.slane %v267, 5
      %v270 = vsel %vm206, %v265, %v269
      %v271 = vshrl.u32 %v199, 16
      %v273 = vrot.slane %v271, 4
      %v274 = vor.u32 %v273, %v269
      %v275 = vrot.slane %v274, 4
      %v277 = vshll.u32 %v200, 16
      %v279 = vrot.slane %v277, 5
      %v280 = vsel %vm206, %v275, %v279
      %v281 = vshrl.u32 %v200, 16
      %v283 = vrot.slane %v281, 4
      %v284 = vor.u32 %v283, %v279
      %v285 = vrot.slane %v284, 4
      %v287 = vshll.u32 %v201, 16
      %v289 = vrot.slane %v287, 5
      %v290 = vsel %vm206, %v285, %v289
      %v291 = vshrl.u32 %v201, 16
      %v293 = vrot.slane %v291, 4
      %v294 = vor.u32 %v293, %v289
      %v295 = vrot.slane %v294, 4
      %v297 = vshll.u32 %v202, 16
      %v299 = vrot.slane %v297, 5
      %v300 = vsel %vm206, %v295, %v299
      %v301 = vshrl.u32 %v202, 16
      %v303 = vrot.slane %v301, 4
      %v304 = vor.u32 %v303, %v299
      %v305 = vrot.slane %v304, 4
      %v307 = vshll.u32 %v203, 16
      %v309 = vrot.slane %v307, 5
      %v310 = vsel %vm206, %v305, %v309
      %311 = vrot.lane.b32.xlu0 %v220, 16
      %v312 = vpop.permute.xlu0 %311
      %313 = vrot.lane.b32.xlu0 %v230, 16
      %v314 = vpop.permute.xlu0 %313
      %315 = vrot.lane.b32.xlu0 %v240, 16
      %v316 = vpop.permute.xlu0 %315
      %317 = vrot.lane.b32.xlu0 %v250, 16
      %v318 = vpop.permute.xlu0 %317
      %319 = vrot.lane.b32.xlu0 %v260, 16
      %v320 = vpop.permute.xlu0 %319
      %321 = vrot.lane.b32.xlu0 %v270, 16
      %v322 = vpop.permute.xlu0 %321
      %323 = vrot.lane.b32.xlu0 %v280, 16
      %v324 = vpop.permute.xlu0 %323
      %325 = vrot.lane.b32.xlu0 %v290, 16
      %v326 = vpop.permute.xlu0 %325
      %327 = vrot.lane.b32.xlu0 %v300, 16
      %v328 = vpop.permute.xlu0 %327
      %329 = vrot.lane.b32.xlu0 %v310, 16
      %v330 = vpop.permute.xlu0 %329
      %vm341 = vcmask 257152
      %342 = vst.msk [vmem:[#allocation2] sm:$0xf] %vm341, %v312
      %343 = vst.msk [vmem:[#allocation2 + $0x8] sm:$0xf] %vm341, %v314
      %344 = vst.msk [vmem:[#allocation2 + $0x10] sm:$0xf] %vm341, %v316
      %345 = vst.msk [vmem:[#allocation2 + $0x18] sm:$0xf] %vm341, %v318
      %346 = vst.msk [vmem:[#allocation2 + $0x20] sm:$0xf] %vm341, %v320
      %347 = vst.msk [vmem:[#allocation2 + $0x28] sm:$0xf] %vm341, %v322
      %348 = vst.msk [vmem:[#allocation2 + $0x30] sm:$0xf] %vm341, %v324
      %349 = vst.msk [vmem:[#allocation2 + $0x38] sm:$0xf] %vm341, %v326
      %350 = vst.msk [vmem:[#allocation2 + $0x40] sm:$0xf] %vm341, %v328
      %351 = vst.msk [vmem:[#allocation2 + $0x48] sm:$0xf] %vm341, %v330
      %v352 = vld [vmem:[%s165] sm:$0xe]
      %v353 = vld [vmem:[%s165 + $0x4] sm:$0xf]
      %v354 = vld [vmem:[%s165 + $0x8] sm:$0xf]
      %v355 = vld [vmem:[%s165 + $0xc] sm:$0xf]
      %v356 = vld [vmem:[%s165 + $0x10] sm:$0xf]
      %v357 = vld [vmem:[%s165 + $0x14] sm:$0xf]
      %v358 = vld [vmem:[%s165 + $0x18] sm:$0xf]
      %v359 = vld [vmem:[%s165 + $0x1c] sm:$0xf]
      %v360 = vld [vmem:[%s165 + $0x20] sm:$0xf]
      %v361 = vld [vmem:[%s165 + $0x24] sm:$0xf]
      %v362 = vld [vmem:[%s165 + $0x28] sm:$0x1]
      %vm374 = vcmask 1042432
      %vm375 = vcmask 1046532
      %vm376 = vmor %vm374, %vm375
      %v377 = vrot.slane %v352, 5
      %v378 = vrot.slane %v377, 4
      %v379 = vrot.slane %v353, 5
      %v380 = vsel %vm376, %v378, %v379
      %v381 = vrot.slane %v379, 4
      %v382 = vrot.slane %v354, 5
      %v383 = vsel %vm376, %v381, %v382
      %v384 = vrot.slane %v382, 4
      %v385 = vrot.slane %v355, 5
      %v386 = vsel %vm376, %v384, %v385
      %v387 = vrot.slane %v385, 4
      %v388 = vrot.slane %v356, 5
      %v389 = vsel %vm376, %v387, %v388
      %v390 = vrot.slane %v388, 4
      %v391 = vrot.slane %v357, 5
      %v392 = vsel %vm376, %v390, %v391
      %v393 = vrot.slane %v391, 4
      %v394 = vrot.slane %v358, 5
      %v395 = vsel %vm376, %v393, %v394
      %v396 = vrot.slane %v394, 4
      %v397 = vrot.slane %v359, 5
      %v398 = vsel %vm376, %v396, %v397
      %v399 = vrot.slane %v397, 4
      %v400 = vrot.slane %v360, 5
      %v401 = vsel %vm376, %v399, %v400
      %v402 = vrot.slane %v400, 4
      %v403 = vrot.slane %v361, 5
      %v404 = vsel %vm376, %v402, %v403
      %v405 = vrot.slane %v403, 4
      %v406 = vrot.slane %v362, 5
      %v407 = vsel %vm376, %v405, %v406
      %408 = vrot.lane.b32.xlu0 %v380, 32
      %v409 = vpop.permute.xlu0 %408
      %410 = vrot.lane.b32.xlu0 %v383, 32
      %v411 = vpop.permute.xlu0 %410
      %412 = vrot.lane.b32.xlu0 %v386, 32
      %v413 = vpop.permute.xlu0 %412
      %414 = vrot.lane.b32.xlu0 %v389, 32
      %v415 = vpop.permute.xlu0 %414
      %416 = vrot.lane.b32.xlu0 %v392, 32
      %v417 = vpop.permute.xlu0 %416
      %418 = vrot.lane.b32.xlu0 %v395, 32
      %v419 = vpop.permute.xlu0 %418
      %420 = vrot.lane.b32.xlu0 %v398, 32
      %v421 = vpop.permute.xlu0 %420
      %422 = vrot.lane.b32.xlu0 %v401, 32
      %v423 = vpop.permute.xlu0 %422
      %424 = vrot.lane.b32.xlu0 %v404, 32
      %v425 = vpop.permute.xlu0 %424
      %426 = vrot.lane.b32.xlu0 %v407, 32
      %v427 = vpop.permute.xlu0 %426
      %vm438 = vcmask 388352
      %439 = vst.msk [vmem:[#allocation2] sm:$0xf] %vm438, %v409
      %440 = vst.msk [vmem:[#allocation2 + $0x8] sm:$0xf] %vm438, %v411
      %441 = vst.msk [vmem:[#allocation2 + $0x10] sm:$0xf] %vm438, %v413
      %442 = vst.msk [vmem:[#allocation2 + $0x18] sm:$0xf] %vm438, %v415
      %443 = vst.msk [vmem:[#allocation2 + $0x20] sm:$0xf] %vm438, %v417
      %444 = vst.msk [vmem:[#allocation2 + $0x28] sm:$0xf] %vm438, %v419
      %445 = vst.msk [vmem:[#allocation2 + $0x30] sm:$0xf] %vm438, %v421
      %446 = vst.msk [vmem:[#allocation2 + $0x38] sm:$0xf] %vm438, %v423
      %447 = vst.msk [vmem:[#allocation2 + $0x40] sm:$0xf] %vm438, %v425
      %448 = vst.msk [vmem:[#allocation2 + $0x48] sm:$0xf] %vm438, %v427
      %v449 = vld [vmem:[%s165 + $0x4] sm:$0xe]
      %v450 = vld [vmem:[%s165 + $0x8] sm:$0xf]
      %v451 = vld [vmem:[%s165 + $0xc] sm:$0xf]
      %v452 = vld [vmem:[%s165 + $0x10] sm:$0xf]
      %v453 = vld [vmem:[%s165 + $0x14] sm:$0xf]
      %v454 = vld [vmem:[%s165 + $0x18] sm:$0xf]
      %v455 = vld [vmem:[%s165 + $0x1c] sm:$0xf]
      %v456 = vld [vmem:[%s165 + $0x20] sm:$0xf]
      %v457 = vld [vmem:[%s165 + $0x24] sm:$0xf]
      %v458 = vld [vmem:[%s165 + $0x28] sm:$0xf]
      %v459 = vld [vmem:[%s165 + $0x2c] sm:$0x1]
      %v471 = vrot.slane %v449, 5
      %v472 = vrot.slane %v471, 4
      %v473 = vrot.slane %v450, 5
      %v474 = vsel %vm376, %v472, %v473
      %v475 = vrot.slane %v473, 4
      %v476 = vrot.slane %v451, 5
      %v477 = vsel %vm376, %v475, %v476
      %v478 = vrot.slane %v476, 4
      %v479 = vrot.slane %v452, 5
      %v480 = vsel %vm376, %v478, %v479
      %v481 = vrot.slane %v479, 4
      %v482 = vrot.slane %v453, 5
      %v483 = vsel %vm376, %v481, %v482
      %v484 = vrot.slane %v482, 4
      %v485 = vrot.slane %v454, 5
      %v486 = vsel %vm376, %v484, %v485
      %v487 = vrot.slane %v485, 4
      %v488 = vrot.slane %v455, 5
      %v489 = vsel %vm376, %v487, %v488
      %v490 = vrot.slane %v488, 4
      %v491 = vrot.slane %v456, 5
      %v492 = vsel %vm376, %v490, %v491
      %v493 = vrot.slane %v491, 4
      %v494 = vrot.slane %v457, 5
      %v495 = vsel %vm376, %v493, %v494
      %v496 = vrot.slane %v494, 4
      %v497 = vrot.slane %v458, 5
      %v498 = vsel %vm376, %v496, %v497
      %v499 = vrot.slane %v497, 4
      %v500 = vrot.slane %v459, 5
      %v501 = vsel %vm376, %v499, %v500
      %502 = vrot.lane.b32.xlu0 %v474, 48
      %v503 = vpop.permute.xlu0 %502
      %504 = vrot.lane.b32.xlu0 %v477, 48
      %v505 = vpop.permute.xlu0 %504
      %506 = vrot.lane.b32.xlu0 %v480, 48
      %v507 = vpop.permute.xlu0 %506
      %508 = vrot.lane.b32.xlu0 %v483, 48
      %v509 = vpop.permute.xlu0 %508
      %510 = vrot.lane.b32.xlu0 %v486, 48
      %v511 = vpop.permute.xlu0 %510
      %512 = vrot.lane.b32.xlu0 %v489, 48
      %v513 = vpop.permute.xlu0 %512
      %514 = vrot.lane.b32.xlu0 %v492, 48
      %v515 = vpop.permute.xlu0 %514
      %516 = vrot.lane.b32.xlu0 %v495, 48
      %v517 = vpop.permute.xlu0 %516
      %518 = vrot.lane.b32.xlu0 %v498, 48
      %v519 = vpop.permute.xlu0 %518
      %520 = vrot.lane.b32.xlu0 %v501, 48
      %v521 = vpop.permute.xlu0 %520
      %vm532 = vcmask 519552
      %533 = vst.msk [vmem:[#allocation2] sm:$0xf] %vm532, %v503
      %534 = vst.msk [vmem:[#allocation2 + $0x8] sm:$0xf] %vm532, %v505
      %535 = vst.msk [vmem:[#allocation2 + $0x10] sm:$0xf] %vm532, %v507
      %536 = vst.msk [vmem:[#allocation2 + $0x18] sm:$0xf] %vm532, %v509
      %537 = vst.msk [vmem:[#allocation2 + $0x20] sm:$0xf] %vm532, %v511
      %538 = vst.msk [vmem:[#allocation2 + $0x28] sm:$0xf] %vm532, %v513
      %539 = vst.msk [vmem:[#allocation2 + $0x30] sm:$0xf] %vm532, %v515
      %540 = vst.msk [vmem:[#allocation2 + $0x38] sm:$0xf] %vm532, %v517
      %541 = vst.msk [vmem:[#allocation2 + $0x40] sm:$0xf] %vm532, %v519
      %542 = vst.msk [vmem:[#allocation2 + $0x48] sm:$0xf] %vm532, %v521
      %v543 = vld [vmem:[%s165 + $0x4] sm:$0xe]
      %v544 = vld [vmem:[%s165 + $0x8] sm:$0xf]
      %v545 = vld [vmem:[%s165 + $0xc] sm:$0xf]
      %v546 = vld [vmem:[%s165 + $0x10] sm:$0xf]
      %v547 = vld [vmem:[%s165 + $0x14] sm:$0xf]
      %v548 = vld [vmem:[%s165 + $0x18] sm:$0xf]
      %v549 = vld [vmem:[%s165 + $0x1c] sm:$0xf]
      %v550 = vld [vmem:[%s165 + $0x20] sm:$0xf]
      %v551 = vld [vmem:[%s165 + $0x24] sm:$0xf]
      %v552 = vld [vmem:[%s165 + $0x28] sm:$0xf]
      %v553 = vld [vmem:[%s165 + $0x2c] sm:$0x3]
      %vm554 = vsmask.f32 2304
      %vm555 = vsmask.f32 6416
      %vm556 = vmor %vm554, %vm555
      %v558 = vshrl.u32 %v543, 16
      %v560 = vrot.slane %v558, 5
      %v561 = vshll.u32 %v543, 16
      %v563 = vrot.slane %v561, 6
      %v564 = vor.u32 %v560, %v563
      %v565 = vrot.slane %v564, 4
      %v567 = vshrl.u32 %v544, 16
      %v569 = vrot.slane %v567, 5
      %v570 = vshll.u32 %v544, 16
      %v572 = vrot.slane %v570, 6
      %v573 = vor.u32 %v569, %v572
      %v574 = vsel %vm556, %v565, %v573
      %v575 = vrot.slane %v573, 4
      %v577 = vshrl.u32 %v545, 16
      %v579 = vrot.slane %v577, 5
      %v580 = vshll.u32 %v545, 16
      %v582 = vrot.slane %v580, 6
      %v583 = vor.u32 %v579, %v582
      %v584 = vsel %vm556, %v575, %v583
      %v585 = vrot.slane %v583, 4
      %v587 = vshrl.u32 %v546, 16
      %v589 = vrot.slane %v587, 5
      %v590 = vshll.u32 %v546, 16
      %v592 = vrot.slane %v590, 6
      %v593 = vor.u32 %v589, %v592
      %v594 = vsel %vm556, %v585, %v593
      %v595 = vrot.slane %v593, 4
      %v597 = vshrl.u32 %v547, 16
      %v599 = vrot.slane %v597, 5
      %v600 = vshll.u32 %v547, 16
      %v602 = vrot.slane %v600, 6
      %v603 = vor.u32 %v599, %v602
      %v604 = vsel %vm556, %v595, %v603
      %v605 = vrot.slane %v603, 4
      %v607 = vshrl.u32 %v548, 16
      %v609 = vrot.slane %v607, 5
      %v610 = vshll.u32 %v548, 16
      %v612 = vrot.slane %v610, 6
      %v613 = vor.u32 %v609, %v612
      %v614 = vsel %vm556, %v605, %v613
      %v615 = vrot.slane %v613, 4
      %v617 = vshrl.u32 %v549, 16
      %v619 = vrot.slane %v617, 5
      %v620 = vshll.u32 %v549, 16
      %v622 = vrot.slane %v620, 6
      %v623 = vor.u32 %v619, %v622
      %v624 = vsel %vm556, %v615, %v623
      %v625 = vrot.slane %v623, 4
      %v627 = vshrl.u32 %v550, 16
      %v629 = vrot.slane %v627, 5
      %v630 = vshll.u32 %v550, 16
      %v632 = vrot.slane %v630, 6
      %v633 = vor.u32 %v629, %v632
      %v634 = vsel %vm556, %v625, %v633
      %v635 = vrot.slane %v633, 4
      %v637 = vshrl.u32 %v551, 16
      %v639 = vrot.slane %v637, 5
      %v640 = vshll.u32 %v551, 16
      %v642 = vrot.slane %v640, 6
      %v643 = vor.u32 %v639, %v642
      %v644 = vsel %vm556, %v635, %v643
      %v645 = vrot.slane %v643, 4
      %v647 = vshrl.u32 %v552, 16
      %v649 = vrot.slane %v647, 5
      %v650 = vshll.u32 %v552, 16
      %v652 = vrot.slane %v650, 6
      %v653 = vor.u32 %v649, %v652
      %v654 = vsel %vm556, %v645, %v653
      %v655 = vrot.slane %v653, 4
      %v657 = vshrl.u32 %v553, 16
      %v659 = vrot.slane %v657, 5
      %v660 = vshll.u32 %v553, 16
      %v662 = vrot.slane %v660, 6
      %v663 = vor.u32 %v659, %v662
      %v664 = vsel %vm556, %v655, %v663
      %665 = vrot.lane.b32.xlu0 %v574, 64
      %v666 = vpop.permute.xlu0 %665
      %667 = vrot.lane.b32.xlu0 %v584, 64
      %v668 = vpop.permute.xlu0 %667
      %669 = vrot.lane.b32.xlu0 %v594, 64
      %v670 = vpop.permute.xlu0 %669
      %671 = vrot.lane.b32.xlu0 %v604, 64
      %v672 = vpop.permute.xlu0 %671
      %673 = vrot.lane.b32.xlu0 %v614, 64
      %v674 = vpop.permute.xlu0 %673
      %675 = vrot.lane.b32.xlu0 %v624, 64
      %v676 = vpop.permute.xlu0 %675
      %677 = vrot.lane.b32.xlu0 %v634, 64
      %v678 = vpop.permute.xlu0 %677
      %679 = vrot.lane.b32.xlu0 %v644, 64
      %v680 = vpop.permute.xlu0 %679
      %681 = vrot.lane.b32.xlu0 %v654, 64
      %v682 = vpop.permute.xlu0 %681
      %683 = vrot.lane.b32.xlu0 %v664, 64
      %v684 = vpop.permute.xlu0 %683
      %vm695 = vcmask 650752
      %696 = vst.msk [vmem:[#allocation2] sm:$0xf] %vm695, %v666
      %697 = vst.msk [vmem:[#allocation2 + $0x8] sm:$0xf] %vm695, %v668
      %698 = vst.msk [vmem:[#allocation2 + $0x10] sm:$0xf] %vm695, %v670
      %699 = vst.msk [vmem:[#allocation2 + $0x18] sm:$0xf] %vm695, %v672
      %700 = vst.msk [vmem:[#allocation2 + $0x20] sm:$0xf] %vm695, %v674
      %701 = vst.msk [vmem:[#allocation2 + $0x28] sm:$0xf] %vm695, %v676
      %702 = vst.msk [vmem:[#allocation2 + $0x30] sm:$0xf] %vm695, %v678
      %703 = vst.msk [vmem:[#allocation2 + $0x38] sm:$0xf] %vm695, %v680
      %704 = vst.msk [vmem:[#allocation2 + $0x40] sm:$0xf] %vm695, %v682
      %705 = vst.msk [vmem:[#allocation2 + $0x48] sm:$0xf] %vm695, %v684
      %v706 = vld [vmem:[%s165 + $0x4] sm:$0xc]
      %v707 = vld [vmem:[%s165 + $0x8] sm:$0xf]
      %v708 = vld [vmem:[%s165 + $0xc] sm:$0xf]
      %v709 = vld [vmem:[%s165 + $0x10] sm:$0xf]
      %v710 = vld [vmem:[%s165 + $0x14] sm:$0xf]
      %v711 = vld [vmem:[%s165 + $0x18] sm:$0xf]
      %v712 = vld [vmem:[%s165 + $0x1c] sm:$0xf]
      %v713 = vld [vmem:[%s165 + $0x20] sm:$0xf]
      %v714 = vld [vmem:[%s165 + $0x24] sm:$0xf]
      %v715 = vld [vmem:[%s165 + $0x28] sm:$0xf]
      %v716 = vld [vmem:[%s165 + $0x2c] sm:$0x3]
      %vm728 = vcmask 1041408
      %vm729 = vcmask 1045508
      %vm730 = vmor %vm728, %vm729
      %v731 = vrot.slane %v706, 6
      %v732 = vrot.slane %v731, 4
      %v733 = vrot.slane %v707, 6
      %v734 = vsel %vm730, %v732, %v733
      %v735 = vrot.slane %v733, 4
      %v736 = vrot.slane %v708, 6
      %v737 = vsel %vm730, %v735, %v736
      %v738 = vrot.slane %v736, 4
      %v739 = vrot.slane %v709, 6
      %v740 = vsel %vm730, %v738, %v739
      %v741 = vrot.slane %v739, 4
      %v742 = vrot.slane %v710, 6
      %v743 = vsel %vm730, %v741, %v742
      %v744 = vrot.slane %v742, 4
      %v745 = vrot.slane %v711, 6
      %v746 = vsel %vm730, %v744, %v745
      %v747 = vrot.slane %v745, 4
      %v748 = vrot.slane %v712, 6
      %v749 = vsel %vm730, %v747, %v748
      %v750 = vrot.slane %v748, 4
      %v751 = vrot.slane %v713, 6
      %v752 = vsel %vm730, %v750, %v751
      %v753 = vrot.slane %v751, 4
      %v754 = vrot.slane %v714, 6
      %v755 = vsel %vm730, %v753, %v754
      %v756 = vrot.slane %v754, 4
      %v757 = vrot.slane %v715, 6
      %v758 = vsel %vm730, %v756, %v757
      %v759 = vrot.slane %v757, 4
      %v760 = vrot.slane %v716, 6
      %v761 = vsel %vm730, %v759, %v760
      %762 = vrot.lane.b32.xlu0 %v734, 80
      %v763 = vpop.permute.xlu0 %762
      %764 = vrot.lane.b32.xlu0 %v737, 80
      %v765 = vpop.permute.xlu0 %764
      %766 = vrot.lane.b32.xlu0 %v740, 80
      %v767 = vpop.permute.xlu0 %766
      %768 = vrot.lane.b32.xlu0 %v743, 80
      %v769 = vpop.permute.xlu0 %768
      %770 = vrot.lane.b32.xlu0 %v746, 80
      %v771 = vpop.permute.xlu0 %770
      %772 = vrot.lane.b32.xlu0 %v749, 80
      %v773 = vpop.permute.xlu0 %772
      %774 = vrot.lane.b32.xlu0 %v752, 80
      %v775 = vpop.permute.xlu0 %774
      %776 = vrot.lane.b32.xlu0 %v755, 80
      %v777 = vpop.permute.xlu0 %776
      %778 = vrot.lane.b32.xlu0 %v758, 80
      %v779 = vpop.permute.xlu0 %778
      %780 = vrot.lane.b32.xlu0 %v761, 80
      %v781 = vpop.permute.xlu0 %780
      %vm792 = vcmask 781952
      %793 = vst.msk [vmem:[#allocation2] sm:$0xf] %vm792, %v763
      %794 = vst.msk [vmem:[#allocation2 + $0x8] sm:$0xf] %vm792, %v765
      %795 = vst.msk [vmem:[#allocation2 + $0x10] sm:$0xf] %vm792, %v767
      %796 = vst.msk [vmem:[#allocation2 + $0x18] sm:$0xf] %vm792, %v769
      %797 = vst.msk [vmem:[#allocation2 + $0x20] sm:$0xf] %vm792, %v771
      %798 = vst.msk [vmem:[#allocation2 + $0x28] sm:$0xf] %vm792, %v773
      %799 = vst.msk [vmem:[#allocation2 + $0x30] sm:$0xf] %vm792, %v775
      %800 = vst.msk [vmem:[#allocation2 + $0x38] sm:$0xf] %vm792, %v777
      %801 = vst.msk [vmem:[#allocation2 + $0x40] sm:$0xf] %vm792, %v779
      %802 = vst.msk [vmem:[#allocation2 + $0x48] sm:$0xf] %vm792, %v781
      %v803 = vld [vmem:[%s165 + $0x8] sm:$0xc]
      %v804 = vld [vmem:[%s165 + $0xc] sm:$0xf]
      %v805 = vld [vmem:[%s165 + $0x10] sm:$0xf]
      %v806 = vld [vmem:[%s165 + $0x14] sm:$0xf]
      %v807 = vld [vmem:[%s165 + $0x18] sm:$0xf]
      %v808 = vld [vmem:[%s165 + $0x1c] sm:$0xf]
      %v809 = vld [vmem:[%s165 + $0x20] sm:$0xf]
      %v810 = vld [vmem:[%s165 + $0x24] sm:$0xf]
      %v811 = vld [vmem:[%s165 + $0x28] sm:$0xf]
      %v812 = vld [vmem:[%s165 + $0x2c] sm:$0xf]
      %v813 = vld [vmem:[%s165 + $0x30] sm:$0x3]
      %v825 = vrot.slane %v803, 6
      %v826 = vrot.slane %v825, 4
      %v827 = vrot.slane %v804, 6
      %v828 = vsel %vm730, %v826, %v827
      %v829 = vrot.slane %v827, 4
      %v830 = vrot.slane %v805, 6
      %v831 = vsel %vm730, %v829, %v830
      %v832 = vrot.slane %v830, 4
      %v833 = vrot.slane %v806, 6
      %v834 = vsel %vm730, %v832, %v833
      %v835 = vrot.slane %v833, 4
      %v836 = vrot.slane %v807, 6
      %v837 = vsel %vm730, %v835, %v836
      %v838 = vrot.slane %v836, 4
      %v839 = vrot.slane %v808, 6
      %v840 = vsel %vm730, %v838, %v839
      %v841 = vrot.slane %v839, 4
      %v842 = vrot.slane %v809, 6
      %v843 = vsel %vm730, %v841, %v842
      %v844 = vrot.slane %v842, 4
      %v845 = vrot.slane %v810, 6
      %v846 = vsel %vm730, %v844, %v845
      %v847 = vrot.slane %v845, 4
      %v848 = vrot.slane %v811, 6
      %v849 = vsel %vm730, %v847, %v848
      %v850 = vrot.slane %v848, 4
      %v851 = vrot.slane %v812, 6
      %v852 = vsel %vm730, %v850, %v851
      %v853 = vrot.slane %v851, 4
      %v854 = vrot.slane %v813, 6
      %v855 = vsel %vm730, %v853, %v854
      %856 = vrot.lane.b32.xlu0 %v828, 96
      %v857 = vpop.permute.xlu0 %856
      %858 = vrot.lane.b32.xlu0 %v831, 96
      %v859 = vpop.permute.xlu0 %858
      %860 = vrot.lane.b32.xlu0 %v834, 96
      %v861 = vpop.permute.xlu0 %860
      %862 = vrot.lane.b32.xlu0 %v837, 96
      %v863 = vpop.permute.xlu0 %862
      %864 = vrot.lane.b32.xlu0 %v840, 96
      %v865 = vpop.permute.xlu0 %864
      %866 = vrot.lane.b32.xlu0 %v843, 96
      %v867 = vpop.permute.xlu0 %866
      %868 = vrot.lane.b32.xlu0 %v846, 96
      %v869 = vpop.permute.xlu0 %868
      %870 = vrot.lane.b32.xlu0 %v849, 96
      %v871 = vpop.permute.xlu0 %870
      %872 = vrot.lane.b32.xlu0 %v852, 96
      %v873 = vpop.permute.xlu0 %872
      %874 = vrot.lane.b32.xlu0 %v855, 96
      %v875 = vpop.permute.xlu0 %874
      %vm886 = vcmask 913152
      %887 = vst.msk [vmem:[#allocation2] sm:$0xf] %vm886, %v857
      %888 = vst.msk [vmem:[#allocation2 + $0x8] sm:$0xf] %vm886, %v859
      %889 = vst.msk [vmem:[#allocation2 + $0x10] sm:$0xf] %vm886, %v861
      %890 = vst.msk [vmem:[#allocation2 + $0x18] sm:$0xf] %vm886, %v863
      %891 = vst.msk [vmem:[#allocation2 + $0x20] sm:$0xf] %vm886, %v865
      %892 = vst.msk [vmem:[#allocation2 + $0x28] sm:$0xf] %vm886, %v867
      %893 = vst.msk [vmem:[#allocation2 + $0x30] sm:$0xf] %vm886, %v869
      %894 = vst.msk [vmem:[#allocation2 + $0x38] sm:$0xf] %vm886, %v871
      %895 = vst.msk [vmem:[#allocation2 + $0x40] sm:$0xf] %vm886, %v873
      %896 = vst.msk [vmem:[#allocation2 + $0x48] sm:$0xf] %vm886, %v875
      %v897 = vld [vmem:[%s165 + $0x8] sm:$0xc]
      %v898 = vld [vmem:[%s165 + $0xc] sm:$0xf]
      %v899 = vld [vmem:[%s165 + $0x10] sm:$0xf]
      %v900 = vld [vmem:[%s165 + $0x14] sm:$0xf]
      %v901 = vld [vmem:[%s165 + $0x18] sm:$0xf]
      %v902 = vld [vmem:[%s165 + $0x1c] sm:$0xf]
      %v903 = vld [vmem:[%s165 + $0x20] sm:$0xf]
      %v904 = vld [vmem:[%s165 + $0x24] sm:$0xf]
      %v905 = vld [vmem:[%s165 + $0x28] sm:$0xf]
      %v906 = vld [vmem:[%s165 + $0x2c] sm:$0xf]
      %v907 = vld [vmem:[%s165 + $0x30] sm:$0x7]
      %vm908 = vsmask.f32 1280
      %vm909 = vsmask.f32 5392
      %vm910 = vmor %vm908, %vm909
      %v912 = vshrl.u32 %v897, 16
      %v914 = vrot.slane %v912, 6
      %v915 = vshll.u32 %v897, 16
      %v917 = vrot.slane %v915, 7
      %v918 = vor.u32 %v914, %v917
      %v919 = vrot.slane %v918, 4
      %v921 = vshrl.u32 %v898, 16
      %v923 = vrot.slane %v921, 6
      %v924 = vshll.u32 %v898, 16
      %v926 = vrot.slane %v924, 7
      %v927 = vor.u32 %v923, %v926
      %v928 = vsel %vm910, %v919, %v927
      %v929 = vrot.slane %v927, 4
      %v931 = vshrl.u32 %v899, 16
      %v933 = vrot.slane %v931, 6
      %v934 = vshll.u32 %v899, 16
      %v936 = vrot.slane %v934, 7
      %v937 = vor.u32 %v933, %v936
      %v938 = vsel %vm910, %v929, %v937
      %v939 = vrot.slane %v937, 4
      %v941 = vshrl.u32 %v900, 16
      %v943 = vrot.slane %v941, 6
      %v944 = vshll.u32 %v900, 16
      %v946 = vrot.slane %v944, 7
      %v947 = vor.u32 %v943, %v946
      %v948 = vsel %vm910, %v939, %v947
      %v949 = vrot.slane %v947, 4
      %v951 = vshrl.u32 %v901, 16
      %v953 = vrot.slane %v951, 6
      %v954 = vshll.u32 %v901, 16
      %v956 = vrot.slane %v954, 7
      %v957 = vor.u32 %v953, %v956
      %v958 = vsel %vm910, %v949, %v957
      %v959 = vrot.slane %v957, 4
      %v961 = vshrl.u32 %v902, 16
      %v963 = vrot.slane %v961, 6
      %v964 = vshll.u32 %v902, 16
      %v966 = vrot.slane %v964, 7
      %v967 = vor.u32 %v963, %v966
      %v968 = vsel %vm910, %v959, %v967
      %v969 = vrot.slane %v967, 4
      %v971 = vshrl.u32 %v903, 16
      %v973 = vrot.slane %v971, 6
      %v974 = vshll.u32 %v903, 16
      %v976 = vrot.slane %v974, 7
      %v977 = vor.u32 %v973, %v976
      %v978 = vsel %vm910, %v969, %v977
      %v979 = vrot.slane %v977, 4
      %v981 = vshrl.u32 %v904, 16
      %v983 = vrot.slane %v981, 6
      %v984 = vshll.u32 %v904, 16
      %v986 = vrot.slane %v984, 7
      %v987 = vor.u32 %v983, %v986
      %v988 = vsel %vm910, %v979, %v987
      %v989 = vrot.slane %v987, 4
      %v991 = vshrl.u32 %v905, 16
      %v993 = vrot.slane %v991, 6
      %v994 = vshll.u32 %v905, 16
      %v996 = vrot.slane %v994, 7
      %v997 = vor.u32 %v993, %v996
      %v998 = vsel %vm910, %v989, %v997
      %v999 = vrot.slane %v997, 4
      %v1001 = vshrl.u32 %v906, 16
      %v1003 = vrot.slane %v1001, 6
      %v1004 = vshll.u32 %v906, 16
      %v1006 = vrot.slane %v1004, 7
      %v1007 = vor.u32 %v1003, %v1006
      %v1008 = vsel %vm910, %v999, %v1007
      %v1009 = vrot.slane %v1007, 4
      %v1011 = vshrl.u32 %v907, 16
      %v1013 = vrot.slane %v1011, 6
      %v1014 = vshll.u32 %v907, 16
      %v1016 = vrot.slane %v1014, 7
      %v1017 = vor.u32 %v1013, %v1016
      %v1018 = vsel %vm910, %v1009, %v1017
      %1019 = vrot.lane.b32.xlu0 %v928, 112
      %v1020 = vpop.permute.xlu0 %1019
      %1021 = vrot.lane.b32.xlu0 %v938, 112
      %v1022 = vpop.permute.xlu0 %1021
      %1023 = vrot.lane.b32.xlu0 %v948, 112
      %v1024 = vpop.permute.xlu0 %1023
      %1025 = vrot.lane.b32.xlu0 %v958, 112
      %v1026 = vpop.permute.xlu0 %1025
      %1027 = vrot.lane.b32.xlu0 %v968, 112
      %v1028 = vpop.permute.xlu0 %1027
      %1029 = vrot.lane.b32.xlu0 %v978, 112
      %v1030 = vpop.permute.xlu0 %1029
      %1031 = vrot.lane.b32.xlu0 %v988, 112
      %v1032 = vpop.permute.xlu0 %1031
      %1033 = vrot.lane.b32.xlu0 %v998, 112
      %v1034 = vpop.permute.xlu0 %1033
      %1035 = vrot.lane.b32.xlu0 %v1008, 112
      %v1036 = vpop.permute.xlu0 %1035
      %1037 = vrot.lane.b32.xlu0 %v1018, 112
      %v1038 = vpop.permute.xlu0 %1037
      %vm1049 = vcmask 1044352
      %1050 = vst.msk [vmem:[#allocation2] sm:$0xf] %vm1049, %v1020
      %1051 = vst.msk [vmem:[#allocation2 + $0x8] sm:$0xf] %vm1049, %v1022
      %1052 = vst.msk [vmem:[#allocation2 + $0x10] sm:$0xf] %vm1049, %v1024
      %1053 = vst.msk [vmem:[#allocation2 + $0x18] sm:$0xf] %vm1049, %v1026
      %1054 = vst.msk [vmem:[#allocation2 + $0x20] sm:$0xf] %vm1049, %v1028
      %1055 = vst.msk [vmem:[#allocation2 + $0x28] sm:$0xf] %vm1049, %v1030
      %1056 = vst.msk [vmem:[#allocation2 + $0x30] sm:$0xf] %vm1049, %v1032
      %1057 = vst.msk [vmem:[#allocation2 + $0x38] sm:$0xf] %vm1049, %v1034
      %1058 = vst.msk [vmem:[#allocation2 + $0x40] sm:$0xf] %vm1049, %v1036
      %1059 = vst.msk [vmem:[#allocation2 + $0x48] sm:$0xf] %vm1049, %v1038
      %v1060 = vld [vmem:[%s165 + $0x8] sm:$0x8]
      %v1061 = vld [vmem:[%s165 + $0xc] sm:$0xf]
      %v1062 = vld [vmem:[%s165 + $0x10] sm:$0xf]
      %v1063 = vld [vmem:[%s165 + $0x14] sm:$0xf]
      %v1064 = vld [vmem:[%s165 + $0x18] sm:$0xf]
      %v1065 = vld [vmem:[%s165 + $0x1c] sm:$0xf]
      %v1066 = vld [vmem:[%s165 + $0x20] sm:$0xf]
      %v1067 = vld [vmem:[%s165 + $0x24] sm:$0xf]
      %v1068 = vld [vmem:[%s165 + $0x28] sm:$0xf]
      %v1069 = vld [vmem:[%s165 + $0x2c] sm:$0xf]
      %v1070 = vld [vmem:[%s165 + $0x30] sm:$0x7]
      %vm1082 = vcmask 1040384
      %vm1083 = vcmask 1044484
      %vm1084 = vmor %vm1082, %vm1083
      %v1085 = vrot.slane %v1060, 7
      %v1086 = vrot.slane %v1085, 4
      %v1087 = vrot.slane %v1061, 7
      %v1088 = vsel %vm1084, %v1086, %v1087
      %v1089 = vrot.slane %v1087, 4
      %v1090 = vrot.slane %v1062, 7
      %v1091 = vsel %vm1084, %v1089, %v1090
      %v1092 = vrot.slane %v1090, 4
      %v1093 = vrot.slane %v1063, 7
      %v1094 = vsel %vm1084, %v1092, %v1093
      %v1095 = vrot.slane %v1093, 4
      %v1096 = vrot.slane %v1064, 7
      %v1097 = vsel %vm1084, %v1095, %v1096
      %v1098 = vrot.slane %v1096, 4
      %v1099 = vrot.slane %v1065, 7
      %v1100 = vsel %vm1084, %v1098, %v1099
      %v1101 = vrot.slane %v1099, 4
      %v1102 = vrot.slane %v1066, 7
      %v1103 = vsel %vm1084, %v1101, %v1102
      %v1104 = vrot.slane %v1102, 4
      %v1105 = vrot.slane %v1067, 7
      %v1106 = vsel %vm1084, %v1104, %v1105
      %v1107 = vrot.slane %v1105, 4
      %v1108 = vrot.slane %v1068, 7
      %v1109 = vsel %vm1084, %v1107, %v1108
      %v1110 = vrot.slane %v1108, 4
      %v1111 = vrot.slane %v1069, 7
      %v1112 = vsel %vm1084, %v1110, %v1111
      %v1113 = vrot.slane %v1111, 4
      %v1114 = vrot.slane %v1070, 7
      %v1115 = vsel %vm1084, %v1113, %v1114
      %1126 = vst.msk [vmem:[#allocation2 + $0x4] sm:$0xf] %vm182, %v1088
      %1127 = vst.msk [vmem:[#allocation2 + $0xc] sm:$0xf] %vm182, %v1091
      %1128 = vst.msk [vmem:[#allocation2 + $0x14] sm:$0xf] %vm182, %v1094
      %1129 = vst.msk [vmem:[#allocation2 + $0x1c] sm:$0xf] %vm182, %v1097
      %1130 = vst.msk [vmem:[#allocation2 + $0x24] sm:$0xf] %vm182, %v1100
      %1131 = vst.msk [vmem:[#allocation2 + $0x2c] sm:$0xf] %vm182, %v1103
      %1132 = vst.msk [vmem:[#allocation2 + $0x34] sm:$0xf] %vm182, %v1106
      %1133 = vst.msk [vmem:[#allocation2 + $0x3c] sm:$0xf] %vm182, %v1109
      %1134 = vst.msk [vmem:[#allocation2 + $0x44] sm:$0xf] %vm182, %v1112
      %1135 = vst.msk [vmem:[#allocation2 + $0x4c] sm:$0xf] %vm182, %v1115
      %v1136 = vld [vmem:[#allocation2] sm:$0xff]
      %v1137 = vld [vmem:[#allocation2 + $0x8] sm:$0xff]
      %v1138 = vld [vmem:[#allocation2 + $0x10] sm:$0xff]
      %v1139 = vld [vmem:[#allocation2 + $0x18] sm:$0xff]
      %v1140 = vld [vmem:[#allocation2 + $0x20] sm:$0xff]
      %v1141 = vld [vmem:[#allocation2 + $0x28] sm:$0xff]
      %v1142 = vld [vmem:[#allocation2 + $0x30] sm:$0xff]
      %v1143 = vld [vmem:[#allocation2 + $0x38] sm:$0xff]
      %v1144 = vld [vmem:[#allocation2 + $0x40] sm:$0xff]
      %v1145 = vld [vmem:[#allocation2 + $0x48] sm:$0xff]
      %v1146 = vld [vmem:[%s1] sm:$0xf]
      %v1147 = vld [vmem:[%s1 + $0x4] sm:$0xf]
      %v1148 = vld [vmem:[%s1 + $0x8] sm:$0xf]
      %v1149 = vld [vmem:[%s1 + $0xc] sm:$0xf]
      %v1150 = vld [vmem:[%s1 + $0x10] sm:$0xf]
      %v1151 = vld [vmem:[%s1 + $0x14] sm:$0xf]
      %v1152 = vld [vmem:[%s1 + $0x18] sm:$0xf]
      %v1153 = vld [vmem:[%s1 + $0x1c] sm:$0xf]
      %v1154 = vld [vmem:[%s1 + $0x20] sm:$0xf]
      %v1155 = vld [vmem:[%s1 + $0x24] sm:$0xf]
      %v1156 = vld [vmem:[%s1 + $0x28] sm:$0xf]
      %v1157 = vld [vmem:[%s1 + $0x2c] sm:$0xf]
      %v1158 = vld [vmem:[%s1 + $0x30] sm:$0xf]
      %v1159 = vld [vmem:[%s1 + $0x34] sm:$0xf]
      %v1160 = vld [vmem:[%s1 + $0x38] sm:$0xf]
      %v1161 = vld [vmem:[%s1 + $0x3c] sm:$0xf]
      %v1162 = vld [vmem:[%s1 + $0x40] sm:$0xf]
      %v1163 = vld [vmem:[%s1 + $0x44] sm:$0xf]
      %v1164 = vld [vmem:[%s2] sm:$0x1]
      %v1166 = vperm.slane %v1164, 0
      %v1178 = vunpack.c.l.b16 %v1136
      %v1179 = vunpack.c.h.b16 %v1136
      %v1180 = vunpack.c.l.b16 %v1137
      %v1181 = vunpack.c.h.b16 %v1137
      %v1182 = vunpack.c.l.b16 %v1138
      %v1183 = vunpack.c.h.b16 %v1138
      %v1184 = vunpack.c.l.b16 %v1139
      %v1185 = vunpack.c.h.b16 %v1139
      %v1186 = vunpack.c.l.b16 %v1140
      %v1187 = vunpack.c.h.b16 %v1140
      %v1188 = vunpack.c.l.b16 %v1141
      %v1189 = vunpack.c.h.b16 %v1141
      %v1190 = vunpack.c.l.b16 %v1142
      %v1191 = vunpack.c.h.b16 %v1142
      %v1192 = vunpack.c.l.b16 %v1143
      %v1193 = vunpack.c.h.b16 %v1143
      %v1194 = vunpack.c.l.b16 %v1144
      %v1195 = vunpack.c.h.b16 %v1144
      %v1196 = vunpack.c.l.b16 %v1145
      %v1197 = vunpack.c.h.b16 %v1145
      %v1198 = vpack.c.b16 %v1180, %v1178
      %v1199 = vpack.c.b16 %v1181, %v1179
      %v1200 = vpack.c.b16 %v1184, %v1182
      %v1201 = vpack.c.b16 %v1185, %v1183
      %v1202 = vpack.c.b16 %v1188, %v1186
      %v1203 = vpack.c.b16 %v1189, %v1187
      %v1204 = vpack.c.b16 %v1192, %v1190
      %v1205 = vpack.c.b16 %v1193, %v1191
      %v1206 = vpack.c.b16 %v1196, %v1194
      %v1207 = vpack.c.b16 %v1197, %v1195
      %v1231 = vunpack.c.l.b16 %v1146
      %v1232 = vunpack.c.l.b16 %v1147
      %v1233 = vunpack.c.l.b16 %v1148
      %v1234 = vunpack.c.l.b16 %v1149
      %v1235 = vunpack.c.l.b16 %v1150
      %v1236 = vunpack.c.l.b16 %v1151
      %v1237 = vunpack.c.l.b16 %v1152
      %v1238 = vunpack.c.l.b16 %v1153
      %v1239 = vunpack.c.l.b16 %v1154
      %v1240 = vunpack.c.l.b16 %v1155
      %v1241 = vunpack.c.l.b16 %v1156
      %v1242 = vunpack.c.l.b16 %v1157
      %v1243 = vunpack.c.l.b16 %v1158
      %v1244 = vunpack.c.l.b16 %v1159
      %v1245 = vunpack.c.l.b16 %v1160
      %v1246 = vunpack.c.l.b16 %v1161
      %v1247 = vunpack.c.l.b16 %v1162
      %v1248 = vunpack.c.l.b16 %v1163
      %v1249 = vpack.c.b16 %v1232, %v1231
      %v1250 = vpack.c.b16 %v1234, %v1233
      %v1251 = vpack.c.b16 %v1236, %v1235
      %v1252 = vpack.c.b16 %v1238, %v1237
      %v1253 = vpack.c.b16 %v1240, %v1239
      %v1254 = vpack.c.b16 %v1242, %v1241
      %v1255 = vpack.c.b16 %v1244, %v1243
      %v1256 = vpack.c.b16 %v1246, %v1245
      %v1257 = vpack.c.b16 %v1248, %v1247
      %vm1267 = vcmask 130048
      %v1269 = vsel %vm1267, %v1199, 0
      %v1272 = vsel %vm1267, %v1201, 0
      %v1275 = vsel %vm1267, %v1203, 0
      %v1278 = vsel %vm1267, %v1205, 0
      %v1281 = vsel %vm1267, %v1207, 0
      %1283 = vmatpush.bf16.msra.mxu0 %v1256
      %1284 = vmatpush.bf16.msra.mxu0 %v1255
      %1285 = vmatpush.bf16.msra.mxu0 %v1254
      %1286 = vmatpush.bf16.msra.mxu0 %v1253
      %1287 = vmatpush.bf16.msra.mxu0 %v1252
      %1288 = vmatpush.bf16.msra.mxu0 %v1251
      %1289 = vmatpush.bf16.msra.mxu0 %v1250
      %1290 = vmatpush.bf16.msra.mxu0 %v1249
      %1291 = vmatmul.bf16.gmra.mxu0 %v1198
      %v1292 = vpop.f32.mrf.mxu0
      %v1293 = vadd.f32 %v1166, %v1292
      %v1294 = vpop.f32.mrf.mxu0
      %v1295 = vadd.f32 %v1166, %v1294
      %1296 = vmatmul.bf16.gmra.mxu0 %v1200
      %v1297 = vpop.f32.mrf.mxu0
      %v1298 = vadd.f32 %v1166, %v1297
      %v1299 = vpop.f32.mrf.mxu0
      %v1300 = vadd.f32 %v1166, %v1299
      %1301 = vmatmul.bf16.gmra.mxu0 %v1202
      %v1302 = vpop.f32.mrf.mxu0
      %v1303 = vadd.f32 %v1166, %v1302
      %v1304 = vpop.f32.mrf.mxu0
      %v1305 = vadd.f32 %v1166, %v1304
      %1306 = vmatmul.bf16.gmra.mxu0 %v1204
      %v1307 = vpop.f32.mrf.mxu0
      %v1308 = vadd.f32 %v1166, %v1307
      %v1309 = vpop.f32.mrf.mxu0
      %v1310 = vadd.f32 %v1166, %v1309
      %1311 = vmatmul.bf16.gmra.mxu0 %v1206
      %v1312 = vpop.f32.mrf.mxu0
      %v1313 = vadd.f32 %v1166, %v1312
      %v1314 = vpop.f32.mrf.mxu0
      %v1315 = vadd.f32 %v1166, %v1314
      %1316 = vdwg.mxu0
      %1317 = vmatpush.bf16.msra.mxu0 0
      %1318 = vmatpush.bf16.msra.mxu0 0
      %1319 = vmatpush.bf16.msra.mxu0 0
      %1320 = vmatpush.bf16.msra.mxu0 0
      %1321 = vmatpush.bf16.msra.mxu0 0
      %1322 = vmatpush.bf16.msra.mxu0 0
      %1323 = vmatpush.bf16.msra.mxu0 0
      %1324 = vmatpush.bf16.msra.mxu0 %v1257
      %1325 = vmatmul.bf16.gmra.mxu0 %v1269
      %v1326 = vpop.f32.mrf.mxu0
      %v1327 = vadd.f32 %v1293, %v1326
      %v1328 = vpop.f32.mrf.mxu0
      %v1329 = vadd.f32 %v1295, %v1328
      %1330 = vmatmul.bf16.gmra.mxu0 %v1272
      %v1331 = vpop.f32.mrf.mxu0
      %v1332 = vadd.f32 %v1298, %v1331
      %v1333 = vpop.f32.mrf.mxu0
      %v1334 = vadd.f32 %v1300, %v1333
      %1335 = vmatmul.bf16.gmra.mxu0 %v1275
      %v1336 = vpop.f32.mrf.mxu0
      %v1337 = vadd.f32 %v1303, %v1336
      %v1338 = vpop.f32.mrf.mxu0
      %v1339 = vadd.f32 %v1305, %v1338
      %1340 = vmatmul.bf16.gmra.mxu0 %v1278
      %v1341 = vpop.f32.mrf.mxu0
      %v1342 = vadd.f32 %v1308, %v1341
      %v1343 = vpop.f32.mrf.mxu0
      %v1344 = vadd.f32 %v1310, %v1343
      %1345 = vmatmul.bf16.gmra.mxu0 %v1281
      %v1346 = vpop.f32.mrf.mxu0
      %v1347 = vadd.f32 %v1313, %v1346
      %v1348 = vpop.f32.mrf.mxu0
      %v1349 = vadd.f32 %v1315, %v1348
      %1350 = vdwg.mxu0
      %v1351 = vsub.f32 0.0, %v1327
      %v1352 = vsub.f32 0.0, %v1329
      %v1353 = vsub.f32 0.0, %v1332
      %v1354 = vsub.f32 0.0, %v1334
      %v1355 = vsub.f32 0.0, %v1337
      %v1356 = vsub.f32 0.0, %v1339
      %v1357 = vsub.f32 0.0, %v1342
      %v1358 = vsub.f32 0.0, %v1344
      %v1359 = vsub.f32 0.0, %v1347
      %v1360 = vsub.f32 0.0, %v1349
      %v1361 = vmul.f32 %v1351, 1.442695
      %v1362 = vpow.pop %v1361
      %v1363 = vmul.f32 %v1352, 1.442695
      %v1364 = vpow.pop %v1363
      %v1365 = vmul.f32 %v1353, 1.442695
      %v1366 = vpow.pop %v1365
      %v1367 = vmul.f32 %v1354, 1.442695
      %v1368 = vpow.pop %v1367
      %v1369 = vmul.f32 %v1355, 1.442695
      %v1370 = vpow.pop %v1369
      %v1371 = vmul.f32 %v1356, 1.442695
      %v1372 = vpow.pop %v1371
      %v1373 = vmul.f32 %v1357, 1.442695
      %v1374 = vpow.pop %v1373
      %v1375 = vmul.f32 %v1358, 1.442695
      %v1376 = vpow.pop %v1375
      %v1377 = vmul.f32 %v1359, 1.442695
      %v1378 = vpow.pop %v1377
      %v1379 = vmul.f32 %v1360, 1.442695
      %v1380 = vpow.pop %v1379
      %v1381 = vadd.f32 %v1362, 1.0
      %v1382 = vadd.f32 %v1364, 1.0
      %v1383 = vadd.f32 %v1366, 1.0
      %v1384 = vadd.f32 %v1368, 1.0
      %v1385 = vadd.f32 %v1370, 1.0
      %v1386 = vadd.f32 %v1372, 1.0
      %v1387 = vadd.f32 %v1374, 1.0
      %v1388 = vadd.f32 %v1376, 1.0
      %v1389 = vadd.f32 %v1378, 1.0
      %v1390 = vadd.f32 %v1380, 1.0
      %v1391 = vrcp.pop %v1381
      %v1392 = vrcp.pop %v1382
      %v1393 = vrcp.pop %v1383
      %v1394 = vrcp.pop %v1384
      %v1395 = vrcp.pop %v1385
      %v1396 = vrcp.pop %v1386
      %v1397 = vrcp.pop %v1387
      %v1398 = vrcp.pop %v1388
      %v1399 = vrcp.pop %v1389
      %v1400 = vrcp.pop %v1390
      %v1401 = vmul.f32 %v1327, %v1391
      %v1402 = vmul.f32 %v1329, %v1392
      %v1403 = vmul.f32 %v1332, %v1393
      %v1404 = vmul.f32 %v1334, %v1394
      %v1405 = vmul.f32 %v1337, %v1395
      %v1406 = vmul.f32 %v1339, %v1396
      %v1407 = vmul.f32 %v1342, %v1397
      %v1408 = vmul.f32 %v1344, %v1398
      %v1409 = vmul.f32 %v1347, %v1399
      %v1410 = vmul.f32 %v1349, %v1400
      %vm1411 = vcmask 64512
      %1412 = vst.msk [vmem:[%s170] sm:$0xff] %vm1411, %v1401
      %1413 = vst.msk [vmem:[%s170 + $0x8] sm:$0xff] %vm1411, %v1402
      %1414 = vst.msk [vmem:[%s170 + $0x10] sm:$0xff] %vm1411, %v1403
      %1415 = vst.msk [vmem:[%s170 + $0x18] sm:$0xff] %vm1411, %v1404
      %1416 = vst.msk [vmem:[%s170 + $0x20] sm:$0xff] %vm1411, %v1405
      %1417 = vst.msk [vmem:[%s170 + $0x28] sm:$0xff] %vm1411, %v1406
      %1418 = vst.msk [vmem:[%s170 + $0x30] sm:$0xff] %vm1411, %v1407
      %1419 = vst.msk [vmem:[%s170 + $0x38] sm:$0xff] %vm1411, %v1408
      %1420 = vst.msk [vmem:[%s170 + $0x40] sm:$0xff] %vm1411, %v1409
      %1421 = vst.msk [vmem:[%s170 + $0x48] sm:$0xff] %vm1411, %v1410
      %p1422 = scmp.lt.s32.totalorder %s14, 1
      %s1423 = scalar_select %p1422, %s14, 1
      %s1424 = smul.addr %s1423, 10
      %s1425 = smul.addr %s1424, 8
      %s1426 = scalar_lea.vmem %s3, %s1425
      // Predicated region
      $region33: #{tpu_custom_call.1} parent=31 // pred_check
        %p1427 = pneg %p100
      $region34: #{tpu_custom_call.1} parent=31 // pred_check_branch
        %1429 = sbr.rel (%p1427) target = $region36
      $region35: #{tpu_custom_call.1} parent=31 // pred_region
        _
      $region36: #{tpu_custom_call.1} parent=31 // pred_fallthru
        _
    $region32: #{tpu_custom_call.1} parent=5 // pred_fallthru
      _
    %p1430 = scmp.le.s32.totalorder 2, %s9
    // Predicated region
    $region37: #{tpu_custom_call.1} parent=5 // pred_check
      %p1431 = pneg %p1430
    $region38: #{tpu_custom_call.1} parent=5 // pred_check_branch
      %1433 = sbr.rel (%p1431) target = $region40
    $region39: #{tpu_custom_call.1} parent=5 // pred_region
      %s1434 = ssub.s32 %s9, 2
      // Predicated region
      $region41: #{tpu_custom_call.1} parent=39 // pred_check
        %p1435 = pneg %p106
      $region42: #{tpu_custom_call.1} parent=39 // pred_check_branch
        %1437 = sbr.rel (%p1435) target = $region44
      $region43: #{tpu_custom_call.1} parent=39 // pred_region
        %p1438 = scmp.lt.s32.totalorder %s15, 1
        %s1439 = scalar_select %p1438, %s15, 1
        %s1440 = smul.addr %s1439, 10
        %s1441 = smul.addr %s1440, 8
        %s1442 = scalar_lea.vmem %s3, %s1441
      $region44: #{tpu_custom_call.1} parent=39 // pred_fallthru
        _
    $region40: #{tpu_custom_call.1} parent=5 // pred_fallthru
      _
  $region6: #{tpu_custom_call.1} parent=0 // loop_footer
    %s13 = sadd.s32 1, %s9
  $region7: #{tpu_custom_call.1} parent=0 // loop_footer_branch
    %8 = sbr.rel target = $region3
  $region8: #{tpu_custom_call.1} parent=0 // loop_exit
    _

</llo_original>
